<compile_context>
chip_gen: v5e
topology: v5e:2x2
jax: 0.10.0
libtpu: 0.0.40
codegen_flags: <defaults>
</compile_context>

<pallas_src>
import jax
import jax.numpy as jnp
from jax.experimental import pallas as pl
from jax.experimental.pallas import tpu as pltpu

LANE = 128  # TPU lane width; fc2 output columns are padded to this.


def _round_up(x, m):
    return ((x + m - 1) // m) * m


def _ntk_kernel(x_ref, w1t_ref, w2t_ref, b_ref, o_ref):
    # First layer, both branches at once: (TM, D) @ (D, 2H) in native MXU
    # orientation.  The x_width**-0.5 scale is folded into w1t.
    h = jnp.dot(x_ref[...], w1t_ref[...], preferred_element_type=jnp.float32)
    h = jnp.maximum(h, 0.0).astype(w2t_ref.dtype)
    # Second layer: (TM, 2H) @ (2H, 128).  w2t = [W2 | -W2_init]^T * alpha/H,
    # so this single MXU accumulation IS the trained-minus-init difference.
    acc = jnp.dot(h, w2t_ref[...], preferred_element_type=jnp.float32)
    o_ref[...] = (acc + b_ref[...]).astype(o_ref.dtype)


def _vmem_policy():
    """(vmem_limit_bytes, usable_budget_bytes) for the current TPU generation."""
    cap = 128 * 1024 * 1024
    try:
        cap = int(pltpu.get_tpu_info().vmem_capacity_bytes)
    except Exception:
        pass  # conservative default if the query is unavailable
    # ~3/4 of physical VMEM: 96 MiB on v5e/v6e (128 MiB), 48 MiB on v7x (64 MiB/TC).
    limit = min((cap * 3) // 4, 96 * 1024 * 1024)
    budget = limit - 8 * 1024 * 1024  # headroom for Mosaic internal scratch
    return limit, budget


def _pick_tile_m(batch, d, h2, budget, itemsize):
    """Largest batch tile keeping resident weights + pipelined x/out tiles in budget."""
    # Weights/bias budgeted at 2x: the pipeline may double-buffer even the
    # grid-invariant blocks (conservative instead of forcing pl.Buffered(1)).
    resident = 2 * (itemsize * (d * h2 + h2 * LANE) + 4 * LANE)
    per_row = 2 * (itemsize * d + 4 * LANE)  # x tile + f32 out tile, double-buffered
    avail = budget - resident
    if avail < 8 * per_row:
        # TODO(synk): H-tiled fallback (second "arbitrary" grid axis over 2H with an
        # f32 accumulator + pl.when init/finalize) for NTK widths whose weights do
        # not fit in per-core VMEM (first breaks on v7x's 64 MiB).
        raise ValueError(
            f"Resident NTK weights ({resident} bytes incl. 2x buffering) do not fit "
            f"the VMEM budget ({budget} bytes); an H-tiled kernel variant is required.")
    tm = min(avail // per_row, 4096)
    if batch > 8:
        # Keep >= 2 grid steps so the 'parallel' batch axis can feed both v7x
        # TensorCores (one extra ~0.35 us step is noise on single-TC v5e/v6e).
        tm = min(tm, _round_up(-(-batch // 2), 8))
    tm = min(tm, _round_up(batch, 8))
    return max(8, (tm // 8) * 8)


def two_layer_ntk_forward(x, w1, w1_init, w2, w2_init, b2, b2_init, *,
                          alpha=1.0, compute_dtype=jnp.float32):
    """
    x:        (B, D)  rows = samples, D = x_width
    w1:       (H, D)  fc1.weight          (fc1 has no bias per module default)
    w1_init:  (H, D)  init_fc1.weight
    w2:       (O, H)  fc2.weight
    w2_init:  (O, H)  init_fc2.weight
    b2:       (O,)    fc2.bias
    b2_init:  (O,)    init_fc2.bias
    returns:  (B, O)  alpha/H * (fc2(relu(fc1(xn))) - init branch)

    compute_dtype=jnp.bfloat16 halves weight VMEM / HBM traffic and ~doubles
    MXU throughput on v6e/v7x, but the NTK output is a small difference of
    nearly equal branches; validate tolerance before enabling (default f32).
    """
    B, D = x.shape
    H = w1.shape[0]
    O = w2.shape[0]
    H2 = 2 * H
    f32 = jnp.float32
    cdt = compute_dtype

    inv_sqrt_d = float(D) ** -0.5
    out_scale = float(alpha) / float(H)

    # ---- One-time weight prep (wrapper-side, amortized over every batch tile) ----
    # Branch fusion + scale folding:
    #   relu(xn @ W1.T) == relu(x @ (inv_sqrt_d * W1).T)     (relu pos. homogeneous)
    #   out - out0     == relu_both @ [W2 | -W2_init].T + (b2 - b2_init)
    w1cat = jnp.concatenate([w1, w1_init], axis=0).astype(f32) * inv_sqrt_d   # (2H, D)
    w1t = w1cat.T.astype(cdt)                                                 # (D, 2H)

    w2cat = jnp.concatenate([w2.astype(f32), -w2_init.astype(f32)], axis=1)   # (O, 2H)
    w2cat = w2cat * out_scale
    w2t = jnp.zeros((H2, LANE), f32).at[:, :O].set(w2cat.T).astype(cdt)       # (2H, 128)

    bdiff = (b2.astype(f32) - b2_init.astype(f32)) * out_scale
    b_pad = jnp.zeros((1, LANE), f32).at[0, :O].set(bdiff)                    # (1, 128)

    # ---- Tiling / VMEM policy ----
    vmem_limit, vmem_budget = _vmem_policy()
    itemsize = jnp.dtype(cdt).itemsize
    tm = _pick_tile_m(B, D, H2, vmem_budget, itemsize)
    Bp = _round_up(B, tm)
    xp = x.astype(cdt)
    if Bp != B:
        xp = jnp.pad(xp, ((0, Bp - B), (0, 0)))

    const = lambda i: (0, 0)  # grid-invariant: fused weights stay VMEM-resident

    flops = 2 * Bp * H2 * (D + LANE)  # both fused matmuls
    bytes_accessed = (itemsize * (Bp * D + D * H2 + H2 * LANE)
                      + 4 * (LANE + Bp * LANE))

    out = pl.pallas_call(
        _ntk_kernel,
        out_shape=jax.ShapeDtypeStruct((Bp, LANE), f32),
        grid=(pl.cdiv(Bp, tm),),
        in_specs=[
            pl.BlockSpec((tm, D), lambda i: (i, 0)),   # x tile (auto double-buffered)
            pl.BlockSpec((D, H2), const),              # [W1; W1_init]^T * D**-0.5
            pl.BlockSpec((H2, LANE), const),           # [W2 | -W2_init]^T * alpha/H (padded)
            pl.BlockSpec((1, LANE), const),            # (b2 - b2_init) * alpha/H (padded)
        ],
        out_specs=pl.BlockSpec((tm, LANE), lambda i: (i, 0)),
        compiler_params=pltpu.CompilerParams(
            dimension_semantics=("parallel",),
            vmem_limit_bytes=vmem_limit,
        ),
        cost_estimate=pl.CostEstimate(
            flops=flops, transcendentals=0, bytes_accessed=bytes_accessed),
    )(xp, w1t, w2t, b_pad)

    # Drop batch padding and fc2 lane padding.  Padded batch rows hold the
    # scaled bias diff, so this slice must stay.
    return out[:B, :O]


if __name__ == "__main__":
    # Small shapes consistent with TwoLayerNet_NTK(x_width=D, l1_width=H, num_classes=2).
    B, D, H, O = 16, 128, 64, 2
    alpha = 1.0

    key = jax.random.PRNGKey(0)
    kx, k1, k2, kb, kd1, kd2, kdb = jax.random.split(key, 7)

    x = jax.random.normal(kx, (B, D), dtype=jnp.float32)

    # Module init: fc weights ~ N(0, 1); fc2 bias ~ U(-1/sqrt(H), 1/sqrt(H)).
    w1_init = jax.random.normal(k1, (H, D), dtype=jnp.float32)
    w2_init = jax.random.normal(k2, (O, H), dtype=jnp.float32)
    bb = 1.0 / jnp.sqrt(jnp.float32(H))
    b2_init = jax.random.uniform(kb, (O,), jnp.float32, -bb, bb)

    # "Trained" parameters = init + small perturbation so both branches differ.
    w1 = w1_init + 0.05 * jax.random.normal(kd1, (H, D), dtype=jnp.float32)
    w2 = w2_init + 0.05 * jax.random.normal(kd2, (O, H), dtype=jnp.float32)
    b2 = b2_init + 0.05 * jax.random.normal(kdb, (O,), dtype=jnp.float32)

    out = two_layer_ntk_forward(x, w1, w1_init, w2, w2_init, b2, b2_init, alpha=alpha)
    jax.block_until_ready(out)

    # Pure-JAX reference with identical math to the PyTorch forward.
    xn = x * (float(D) ** -0.5)
    ref_out = jnp.maximum(xn @ w1.T, 0.0) @ w2.T + b2
    ref_out0 = jnp.maximum(xn @ w1_init.T, 0.0) @ w2_init.T + b2_init
    ref = (ref_out - ref_out0) * (alpha / H)

    assert out.shape == (B, O)
    assert jnp.allclose(out, ref, atol=1e-4, rtol=1e-4), float(jnp.max(jnp.abs(out - ref)))

    print("KERNEL_OK")
</pallas_src>

<mosaic_0001>
module attributes {stable_mosaic.version = 11 : i64} {
  func.func @_ntk_kernel(%arg0: i32, %arg1: memref<8x128xf32, #tpu.memory_space<vmem>>, %arg2: memref<128x128xf32, #tpu.memory_space<vmem>>, %arg3: memref<128x128xf32, #tpu.memory_space<vmem>>, %arg4: memref<1x128xf32, #tpu.memory_space<vmem>>, %arg5: memref<8x128xf32, #tpu.memory_space<vmem>>) attributes {dimension_semantics = [#tpu.dimension_semantics<parallel>], iteration_bounds = array<i64: 2>, scalar_prefetch = 0 : i64, scratch_operands = 0 : i64, tpu.core_type = #tpu.core_type<tc>, window_params = [{transform_indices = @transform_0, window_bounds = array<i64: 8, 128>}, {pipeline_mode = #tpu.pipeline_mode<synchronous>, transform_indices = @transform_1, window_bounds = array<i64: 128, 128>}, {pipeline_mode = #tpu.pipeline_mode<synchronous>, transform_indices = @transform_2, window_bounds = array<i64: 128, 128>}, {pipeline_mode = #tpu.pipeline_mode<synchronous>, transform_indices = @transform_3, window_bounds = array<i64: 1, 128>}, {transform_indices = @transform_4, window_bounds = array<i64: 8, 128>}]} {
    %c0 = arith.constant 0 : index
    %c0_0 = arith.constant 0 : index
    %0 = vector.load %arg1[%c0, %c0_0] : memref<8x128xf32, #tpu.memory_space<vmem>>, vector<8x128xf32>
    %c0_1 = arith.constant 0 : index
    %c0_2 = arith.constant 0 : index
    %1 = vector.load %arg2[%c0_1, %c0_2] : memref<128x128xf32, #tpu.memory_space<vmem>>, vector<128x128xf32>
    %cst = arith.constant dense<0.000000e+00> : vector<8x128xf32>
    %2 = tpu.matmul %0, %1, %cst {dimension_numbers = #tpu.dot_dimension_numbers<[1], [0], [0], [1], [0, 0, 1, 1], [], []>} : vector<8x128xf32>, vector<128x128xf32>, vector<8x128xf32> -> vector<8x128xf32>
    %cst_3 = arith.constant 0.000000e+00 : f32
    %3 = vector.broadcast %cst_3 : f32 to vector<8x128xf32>
    %4 = arith.maximumf %2, %3 : vector<8x128xf32>
    %c0_4 = arith.constant 0 : index
    %c0_5 = arith.constant 0 : index
    %5 = vector.load %arg3[%c0_4, %c0_5] : memref<128x128xf32, #tpu.memory_space<vmem>>, vector<128x128xf32>
    %cst_6 = arith.constant dense<0.000000e+00> : vector<8x128xf32>
    %6 = tpu.matmul %4, %5, %cst_6 {dimension_numbers = #tpu.dot_dimension_numbers<[1], [0], [0], [1], [0, 0, 1, 1], [], []>} : vector<8x128xf32>, vector<128x128xf32>, vector<8x128xf32> -> vector<8x128xf32>
    %c0_7 = arith.constant 0 : index
    %c0_8 = arith.constant 0 : index
    %7 = vector.load %arg4[%c0_7, %c0_8] : memref<1x128xf32, #tpu.memory_space<vmem>>, vector<1x128xf32>
    %8 = vector.broadcast %7 : vector<1x128xf32> to vector<8x128xf32>
    %9 = arith.addf %6, %8 : vector<8x128xf32>
    %c0_9 = arith.constant 0 : index
    %c0_10 = arith.constant 0 : index
    %10 = vector.load %arg5[%c0_9, %c0_10] : memref<8x128xf32, #tpu.memory_space<vmem>>, vector<8x128xf32>
    tpu.vector_store %arg5[%c0_9, %c0_10], %9 {strides = array<i32>} : memref<8x128xf32, #tpu.memory_space<vmem>>, vector<8x128xf32>,
    return
  }
  func.func @transform_0(%arg0: i32) -> (i32, i32) {
    %c0_i32 = arith.constant 0 : i32
    %c0_i32_0 = arith.constant 0 : i32
    return %arg0, %c0_i32 : i32, i32
  }
  func.func @transform_1(%arg0: i32) -> (i32, i32) {
    %c0_i32 = arith.constant 0 : i32
    %c0_i32_0 = arith.constant 0 : i32
    %c0_i32_1 = arith.constant 0 : i32
    return %c0_i32, %c0_i32_0 : i32, i32
  }
  func.func @transform_2(%arg0: i32) -> (i32, i32) {
    %c0_i32 = arith.constant 0 : i32
    %c0_i32_0 = arith.constant 0 : i32
    %c0_i32_1 = arith.constant 0 : i32
    return %c0_i32, %c0_i32_0 : i32, i32
  }
  func.func @transform_3(%arg0: i32) -> (i32, i32) {
    %c0_i32 = arith.constant 0 : i32
    %c0_i32_0 = arith.constant 0 : i32
    %c0_i32_1 = arith.constant 0 : i32
    return %c0_i32, %c0_i32_0 : i32, i32
  }
  func.func @transform_4(%arg0: i32) -> (i32, i32) {
    %c0_i32 = arith.constant 0 : i32
    %c0_i32_0 = arith.constant 0 : i32
    return %arg0, %c0_i32 : i32, i32
  }
}

</mosaic_0001>

<llo_original>
// kernel: tpu_custom_call.1
$region0: #{tpu_custom_call.1}
  #allocation0 [shape = 'u32[]', space=smem, size = 0x4, offset = 0x4, fixed_abs, tag = 'smem constant byte address 0x4 - core index']
  #allocation1 [shape = 'u32[72,128]{1,0:T(1,128)}', space=vmem, size = 0x9000, scoped, tag = 'internal scratch']
  %s0 = inlined_call_operand.hbm [shape: f32[16,128], index: 0, kind: input, shape index: {}]
  %s1 = inlined_call_operand.hbm [shape: f32[128,128], index: 1, kind: input, shape index: {}]
  %s2 = inlined_call_operand.hbm [shape: f32[128,128], index: 2, kind: input, shape index: {}]
  %s3 = inlined_call_operand.vmem [shape: f32[1,128], index: 3, kind: input, shape index: {}]
  %s4 = inlined_call_operand.hbm [shape: f32[16,128], index: 4, kind: output, shape index: {}]
  %s5 = sld [smem:[#allocation0]]
  $region61: #{tpu_custom_call.1} parent=0
    _
  %s7 = ssub.s32 1, %s5
  %s8 = scalar_select 0, %s7, %s5
  $region1: #{tpu_custom_call.1} parent=0
    #allocation2 [shape = 'u8[8192]{0}', space=vmem, size = 0x2000, scoped, tag = 'input window, operand 0']
    #allocation3 [shape = 's32[2]{0}', space=sflag, size = 0x8, scoped, tag = 'scoped memory for tpu_custom_call.1']
    #allocation4 [shape = 's32[2]{0}', space=sflag, size = 0x8, scoped, tag = 'scoped memory for tpu_custom_call.1']
    #allocation5 [shape = 'u8[65536]{0}', space=vmem, size = 0x10000, scoped, tag = 'input window, operand 1, single buffered']
    #allocation6 [shape = 's32[1]{0}', space=sflag, size = 0x4, scoped, tag = 'scoped memory for tpu_custom_call.1']
    #allocation7 [shape = 'u8[65536]{0}', space=vmem, size = 0x10000, scoped, tag = 'input window, operand 2, single buffered']
    #allocation8 [shape = 'u8[8192]{0}', space=vmem, size = 0x2000, scoped, tag = 'output window, operand 0']
    %9 = vsyncpa [#allocation3], 0
    %s10 = scalar_lea.sflag [#allocation3], 1
    %11 = vsyncpa %s10, 0
    %12 = vsyncpa [#allocation6], 0
    %13 = vsyncpa [#allocation4], 0
    %s14 = scalar_lea.sflag [#allocation4], 1
    %15 = vsyncpa %s14, 0
    loop: start=0, step=1, limit=4
    $region2: #{tpu_custom_call.1} parent=1 // loop_pre_header
      _
    $region3: #{tpu_custom_call.1} parent=1 // loop_header
      %s17 = sphi 0, %s21
      %p18 = scmp.ge.s32.totalorder %s17, 4
      %s27 = sphi 0, %s29
      %s30 = sphi 0, %s27
      %s31 = sphi 0, %s30
      %s47 = sphi 0, %s31
      %s51 = sphi 0, %s51
      %s53 = sphi 0, %s51
      %s54 = sphi 0, %s53
      %s68 = sphi 0, %s54
      %s72 = sphi 0, %s72
      %s74 = sphi 0, %s72
      %s75 = sphi 0, %s74
      %s89 = sphi 0, %s75
      %s93 = sphi 0, %s93
      %s95 = sphi 0, %s93
      %s96 = sphi 0, %s95
      %s110 = sphi 0, %s96
      %s116 = sphi 0, %s118
      %s119 = sphi 0, %s116
      %s120 = sphi 0, %s119
      %s136 = sphi 0, %s120
    $region4: #{tpu_custom_call.1} parent=1 // loop_header_branch
      %20 = sbr.rel (%p18) target = $region8
    $region5: #{tpu_custom_call.1} parent=1 // loop_body
      %s22 = ssub.s32 %s17, 1
      %s23 = ssub.s32 %s17, 2
      %s24 = sadd.s32 %s17, 1
      %s25 = ssub.s32 %s17, %s24
      %p26 = scmp.eq.s32.totalorder %s25, 0
      %s28 = sadd.s32 %s27, 1
      %s29 = scalar_select %p26, %s27, %s28
      %p32 = pneg %p26
      %p33 = scmp.eq.s32.totalorder %s17, 1
      %p34 = por %p32, %p33
      %p35 = scmp.ne.s32.totalorder %s27, %s30
      %p36 = scmp.eq.s32.totalorder %s17, 0
      %p37 = por %p35, %p36
      %p38 = scmp.ne.s32.totalorder %s27, %s30
      %p39 = scmp.eq.s32.totalorder %s22, 1
      %p40 = por %p38, %p39
      %p41 = scmp.ne.s32.totalorder %s30, %s31
      %p42 = scmp.eq.s32.totalorder %s22, 0
      %p43 = por %p41, %p42
      %p44 = scmp.ne.s32.totalorder %s30, %s31
      %p45 = scmp.eq.s32.totalorder %s23, 1
      %p46 = por %p44, %p45
      %p48 = scmp.ne.s32.totalorder %s31, %s47
      %p49 = scmp.eq.s32.totalorder %s23, 0
      %p50 = por %p48, %p49
      %s52 = sadd.s32 %s51, 1
      %p55 = scmp.eq.s32.totalorder %s17, 1
      %p56 = scmp.ne.s32.totalorder %s51, %s53
      %p57 = scmp.eq.s32.totalorder %s17, 0
      %p58 = por %p56, %p57
      %p59 = scmp.ne.s32.totalorder %s51, %s53
      %p60 = scmp.eq.s32.totalorder %s22, 1
      %p61 = por %p59, %p60
      %p62 = scmp.ne.s32.totalorder %s53, %s54
      %p63 = scmp.eq.s32.totalorder %s22, 0
      %p64 = por %p62, %p63
      %p65 = scmp.ne.s32.totalorder %s53, %s54
      %p66 = scmp.eq.s32.totalorder %s23, 1
      %p67 = por %p65, %p66
      %p69 = scmp.ne.s32.totalorder %s54, %s68
      %p70 = scmp.eq.s32.totalorder %s23, 0
      %p71 = por %p69, %p70
      %s73 = sadd.s32 %s72, 1
      %p76 = scmp.eq.s32.totalorder %s17, 1
      %p77 = scmp.ne.s32.totalorder %s72, %s74
      %p78 = scmp.eq.s32.totalorder %s17, 0
      %p79 = por %p77, %p78
      %p80 = scmp.ne.s32.totalorder %s72, %s74
      %p81 = scmp.eq.s32.totalorder %s22, 1
      %p82 = por %p80, %p81
      %p83 = scmp.ne.s32.totalorder %s74, %s75
      %p84 = scmp.eq.s32.totalorder %s22, 0
      %p85 = por %p83, %p84
      %p86 = scmp.ne.s32.totalorder %s74, %s75
      %p87 = scmp.eq.s32.totalorder %s23, 1
      %p88 = por %p86, %p87
      %p90 = scmp.ne.s32.totalorder %s75, %s89
      %p91 = scmp.eq.s32.totalorder %s23, 0
      %p92 = por %p90, %p91
      %s94 = sadd.s32 %s93, 1
      %p97 = scmp.eq.s32.totalorder %s17, 1
      %p98 = scmp.ne.s32.totalorder %s93, %s95
      %p99 = scmp.eq.s32.totalorder %s17, 0
      %p100 = por %p98, %p99
      %p101 = scmp.ne.s32.totalorder %s93, %s95
      %p102 = scmp.eq.s32.totalorder %s22, 1
      %p103 = por %p101, %p102
      %p104 = scmp.ne.s32.totalorder %s95, %s96
      %p105 = scmp.eq.s32.totalorder %s22, 0
      %p106 = por %p104, %p105
      %p107 = scmp.ne.s32.totalorder %s95, %s96
      %p108 = scmp.eq.s32.totalorder %s23, 1
      %p109 = por %p107, %p108
      %p111 = scmp.ne.s32.totalorder %s96, %s110
      %p112 = scmp.eq.s32.totalorder %s23, 0
      %p113 = por %p111, %p112
      %s114 = ssub.s32 %s17, %s24
      %p115 = scmp.eq.s32.totalorder %s114, 0
      %s117 = sadd.s32 %s116, 1
      %s118 = scalar_select %p115, %s116, %s117
      %p121 = pneg %p115
      %p122 = scmp.eq.s32.totalorder %s17, 1
      %p123 = por %p121, %p122
      %p124 = scmp.ne.s32.totalorder %s116, %s119
      %p125 = scmp.eq.s32.totalorder %s17, 0
      %p126 = por %p124, %p125
      %p127 = scmp.ne.s32.totalorder %s116, %s119
      %p128 = scmp.eq.s32.totalorder %s22, 1
      %p129 = por %p127, %p128
      %p130 = scmp.ne.s32.totalorder %s119, %s120
      %p131 = scmp.eq.s32.totalorder %s22, 0
      %p132 = por %p130, %p131
      %p133 = scmp.ne.s32.totalorder %s119, %s120
      %p134 = scmp.eq.s32.totalorder %s23, 1
      %p135 = por %p133, %p134
      %p137 = scmp.ne.s32.totalorder %s120, %s136
      %p138 = scmp.eq.s32.totalorder %s23, 0
      %p139 = por %p137, %p138
      %p140 = scmp.le.s32.totalorder 1, %s17
      %p141 = scmp.lt.s32.totalorder %s17, 3
      %p142 = pnand %p140, %p141
      %p143 = pneg %p142
      // Predicated region
      $region9: #{tpu_custom_call.1} parent=5 // pred_check
        _
      $region10: #{tpu_custom_call.1} parent=5 // pred_check_branch
        %145 = sbr.rel (%p142) target = $region12
      $region11: #{tpu_custom_call.1} parent=5 // pred_region
        %s146 = ssub.s32 %s17, 1
        // Predicated region
        $region13: #{tpu_custom_call.1} parent=11 // pred_check
          %p147 = pneg %p64
        $region14: #{tpu_custom_call.1} parent=11 // pred_check_branch
          %149 = sbr.rel (%p147) target = $region16
        $region15: #{tpu_custom_call.1} parent=11 // pred_region
          %151 = vsyncadd [#allocation6], 0
          %s152 = sshll.u32 %s1, 4
          %s153 = int_to_ptr.hbm [resolvable:$true] %s152
          %s154 = sshll.u32 [#allocation5], 4
          %s155 = int_to_ptr.vmem [resolvable:$true] %s154
          %160 = dma.hbm_to_vmem [thread:$0]  %s153, 2048, %s155, [#allocation6], 128, 128, 8
        $region16: #{tpu_custom_call.1} parent=11 // pred_fallthru
          _
        // Predicated region
        $region17: #{tpu_custom_call.1} parent=11 // pred_check
          %p161 = pneg %p85
        $region18: #{tpu_custom_call.1} parent=11 // pred_check_branch
          %163 = sbr.rel (%p161) target = $region20
        $region19: #{tpu_custom_call.1} parent=11 // pred_region
          %165 = vsyncadd [#allocation6], 0
          %s166 = sshll.u32 %s2, 4
          %s167 = int_to_ptr.hbm [resolvable:$true] %s166
          %s168 = sshll.u32 [#allocation7], 4
          %s169 = int_to_ptr.vmem [resolvable:$true] %s168
          %174 = dma.hbm_to_vmem [thread:$0]  %s167, 2048, %s169, [#allocation6], 128, 128, 8
        $region20: #{tpu_custom_call.1} parent=11 // pred_fallthru
          _
        // Predicated region
        $region21: #{tpu_custom_call.1} parent=11 // pred_check
          %p175 = pneg %p106
        $region22: #{tpu_custom_call.1} parent=11 // pred_check_branch
          %177 = sbr.rel (%p175) target = $region24
        $region23: #{tpu_custom_call.1} parent=11 // pred_region
          _
        $region24: #{tpu_custom_call.1} parent=11 // pred_fallthru
          _
      $region12: #{tpu_custom_call.1} parent=5 // pred_fallthru
        _
      %p178 = scmp.lt.s32.totalorder %s17, 2
      // Predicated region
      $region25: #{tpu_custom_call.1} parent=5 // pred_check
        %p179 = pneg %p178
      $region26: #{tpu_custom_call.1} parent=5 // pred_check_branch
        %181 = sbr.rel (%p179) target = $region28
      $region27: #{tpu_custom_call.1} parent=5 // pred_region
        // Predicated region
        $region29: #{tpu_custom_call.1} parent=27 // pred_check
          %p182 = pneg %p37
        $region30: #{tpu_custom_call.1} parent=27 // pred_check_branch
          %184 = sbr.rel (%p182) target = $region32
        $region31: #{tpu_custom_call.1} parent=27 // pred_region
          %s185 = sand.u32 %s27, 1
          %s186 = scalar_lea.sflag [#allocation3], %s185
          %s187 = sand.u32 %s27, 1
          %s188 = smul.addr %s187, 8
          %s189 = scalar_lea.vmem [#allocation2], %s188
          %191 = vsyncadd %s186, 0
          %s192 = smul.addr %s17, 8
          %s193 = scalar_lea.hbm %s0, %s192
          %s195 = sshll.u32 %s193, 4
          %s196 = int_to_ptr.hbm [resolvable:$true] %s195
          %s197 = sshll.u32 %s189, 4
          %s198 = int_to_ptr.vmem [resolvable:$true] %s197
          %200 = dma.hbm_to_vmem [thread:$0]  %s196, 128, %s198, %s186
        $region32: #{tpu_custom_call.1} parent=27 // pred_fallthru
          _
      $region28: #{tpu_custom_call.1} parent=5 // pred_fallthru
        _
      %p201 = scmp.le.s32.totalorder 1, %s17
      %p202 = scmp.lt.s32.totalorder %s17, 3
      %p203 = pnand %p201, %p202
      %p204 = pneg %p203
      // Predicated region
      $region33: #{tpu_custom_call.1} parent=5 // pred_check
        _
      $region34: #{tpu_custom_call.1} parent=5 // pred_check_branch
        %206 = sbr.rel (%p203) target = $region36
      $region35: #{tpu_custom_call.1} parent=5 // pred_region
        %s207 = ssub.s32 %s17, 1
        %s208 = sand.u32 %s30, 1
        %s209 = scalar_lea.sflag [#allocation3], %s208
        %s210 = sand.u32 %s30, 1
        %s211 = smul.addr %s210, 8
        %s212 = scalar_lea.vmem [#allocation2], %s211
        // Predicated region
        $region37: #{tpu_custom_call.1} parent=35 // pred_check
          %p213 = pneg %p43
        $region38: #{tpu_custom_call.1} parent=35 // pred_check_branch
          %215 = sbr.rel (%p213) target = $region40
        $region39: #{tpu_custom_call.1} parent=35 // pred_region
          %217 = dma.done %s209, 128
        $region40: #{tpu_custom_call.1} parent=35 // pred_fallthru
          _
        // Predicated region
        $region41: #{tpu_custom_call.1} parent=35 // pred_check
          %p218 = pneg %p64
        $region42: #{tpu_custom_call.1} parent=35 // pred_check_branch
          %220 = sbr.rel (%p218) target = $region44
        $region43: #{tpu_custom_call.1} parent=35 // pred_region
          %222 = dma.done [#allocation6], 2048
        $region44: #{tpu_custom_call.1} parent=35 // pred_fallthru
          _
        // Predicated region
        $region45: #{tpu_custom_call.1} parent=35 // pred_check
          %p223 = pneg %p85
        $region46: #{tpu_custom_call.1} parent=35 // pred_check_branch
          %225 = sbr.rel (%p223) target = $region48
        $region47: #{tpu_custom_call.1} parent=35 // pred_region
          %227 = dma.done [#allocation6], 2048
        $region48: #{tpu_custom_call.1} parent=35 // pred_fallthru
          _
        %s228 = sand.u32 %s30, 1
        %s229 = scalar_lea.sflag [#allocation3], %s228
        %s230 = sand.u32 %s30, 1
        %s231 = smul.addr %s230, 8
        %s232 = scalar_lea.vmem [#allocation2], %s231
        %p233 = pneg %p43
        %p234 = pneg %p40
        %p235 = pneg %p64
        %p236 = pneg %p61
        %p237 = pneg %p85
        %p238 = pneg %p82
        %p239 = pneg %p106
        %p240 = pneg %p103
        %p241 = pneg %p132
        %p242 = pneg %p129
        %s243 = sand.u32 %s119, 1
        %s244 = scalar_lea.sflag [#allocation4], %s243
        %s245 = sand.u32 %s119, 1
        %s246 = smul.addr %s245, 8
        %s247 = scalar_lea.vmem [#allocation8], %s246
        %v248 = vld [vmem:[%s212] sm:$0xff]
        %v249 = vld [vmem:[#allocation5] sm:$0xff]
        %v250 = vld [vmem:[#allocation5 + $0x8] sm:$0xff]
        %v251 = vld [vmem:[#allocation5 + $0x10] sm:$0xff]
        %v252 = vld [vmem:[#allocation5 + $0x18] sm:$0xff]
        %v253 = vld [vmem:[#allocation5 + $0x20] sm:$0xff]
        %v254 = vld [vmem:[#allocation5 + $0x28] sm:$0xff]
        %v255 = vld [vmem:[#allocation5 + $0x30] sm:$0xff]
        %v256 = vld [vmem:[#allocation5 + $0x38] sm:$0xff]
        %v257 = vld [vmem:[#allocation5 + $0x40] sm:$0xff]
        %v258 = vld [vmem:[#allocation5 + $0x48] sm:$0xff]
        %v259 = vld [vmem:[#allocation5 + $0x50] sm:$0xff]
        %v260 = vld [vmem:[#allocation5 + $0x58] sm:$0xff]
        %v261 = vld [vmem:[#allocation5 + $0x60] sm:$0xff]
        %v262 = vld [vmem:[#allocation5 + $0x68] sm:$0xff]
        %v263 = vld [vmem:[#allocation5 + $0x70] sm:$0xff]
        %v264 = vld [vmem:[#allocation5 + $0x78] sm:$0xff]
        %265 = vmatpush.msra.mxu0 %v264
        %266 = vmatpush.msra.mxu0 %v263
        %267 = vmatpush.msra.mxu0 %v262
        %268 = vmatpush.msra.mxu0 %v261
        %269 = vmatpush.msra.mxu0 %v260
        %270 = vmatpush.msra.mxu0 %v259
        %271 = vmatpush.msra.mxu0 %v258
        %272 = vmatpush.msra.mxu0 %v257
        %273 = vmatpush.msra.mxu0 %v256
        %274 = vmatpush.msra.mxu0 %v255
        %275 = vmatpush.msra.mxu0 %v254
        %276 = vmatpush.msra.mxu0 %v253
        %277 = vmatpush.msra.mxu0 %v252
        %278 = vmatpush.msra.mxu0 %v251
        %279 = vmatpush.msra.mxu0 %v250
        %280 = vmatpush.msra.mxu0 %v249
        %281 = vmatmul.f32.gmra.mxu0 %v248
        %v282 = vpop.f32.mrf.mxu0
        %v283 = vadd.f32 0.0, %v282
        %284 = vdwg.mxu0
        %v285 = vmax.f32 %v283, 0.0
        %v286 = vld [vmem:[#allocation7] sm:$0xff]
        %v287 = vld [vmem:[#allocation7 + $0x8] sm:$0xff]
        %v288 = vld [vmem:[#allocation7 + $0x10] sm:$0xff]
        %v289 = vld [vmem:[#allocation7 + $0x18] sm:$0xff]
        %v290 = vld [vmem:[#allocation7 + $0x20] sm:$0xff]
        %v291 = vld [vmem:[#allocation7 + $0x28] sm:$0xff]
        %v292 = vld [vmem:[#allocation7 + $0x30] sm:$0xff]
        %v293 = vld [vmem:[#allocation7 + $0x38] sm:$0xff]
        %v294 = vld [vmem:[#allocation7 + $0x40] sm:$0xff]
        %v295 = vld [vmem:[#allocation7 + $0x48] sm:$0xff]
        %v296 = vld [vmem:[#allocation7 + $0x50] sm:$0xff]
        %v297 = vld [vmem:[#allocation7 + $0x58] sm:$0xff]
        %v298 = vld [vmem:[#allocation7 + $0x60] sm:$0xff]
        %v299 = vld [vmem:[#allocation7 + $0x68] sm:$0xff]
        %v300 = vld [vmem:[#allocation7 + $0x70] sm:$0xff]
        %v301 = vld [vmem:[#allocation7 + $0x78] sm:$0xff]
        %v302 = vld [vmem:[%s3] sm:$0x1]
        %v304 = vperm.slane %v302, 0
        %306 = vmatpush.msra.mxu0 %v301
        %307 = vmatpush.msra.mxu0 %v300
        %308 = vmatpush.msra.mxu0 %v299
        %309 = vmatpush.msra.mxu0 %v298
        %310 = vmatpush.msra.mxu0 %v297
        %311 = vmatpush.msra.mxu0 %v296
        %312 = vmatpush.msra.mxu0 %v295
        %313 = vmatpush.msra.mxu0 %v294
        %314 = vmatpush.msra.mxu0 %v293
        %315 = vmatpush.msra.mxu0 %v292
        %316 = vmatpush.msra.mxu0 %v291
        %317 = vmatpush.msra.mxu0 %v290
        %318 = vmatpush.msra.mxu0 %v289
        %319 = vmatpush.msra.mxu0 %v288
        %320 = vmatpush.msra.mxu0 %v287
        %321 = vmatpush.msra.mxu0 %v286
        %322 = vmatmul.f32.gmra.mxu0 %v285
        %v323 = vpop.f32.mrf.mxu0
        %v324 = vadd.f32 %v304, %v323
        %325 = vdwg.mxu0
        %326 = vst [vmem:[%s247] sm:$0xff] %v324
        %s327 = sand.u32 %s119, 1
        %s328 = scalar_lea.sflag [#allocation4], %s327
        %s329 = sand.u32 %s119, 1
        %s330 = smul.addr %s329, 8
        %s331 = scalar_lea.vmem [#allocation8], %s330
        // Predicated region
        $region49: #{tpu_custom_call.1} parent=35 // pred_check
          %p332 = pneg %p129
        $region50: #{tpu_custom_call.1} parent=35 // pred_check_branch
          %334 = sbr.rel (%p332) target = $region52
        $region51: #{tpu_custom_call.1} parent=35 // pred_region
          %336 = vsyncadd %s328, 0
          %s337 = smul.addr %s22, 8
          %s338 = scalar_lea.hbm %s4, %s337
          %s340 = sshll.u32 %s331, 4
          %s341 = int_to_ptr.vmem [resolvable:$true] %s340
          %s342 = sshll.u32 %s338, 4
          %s343 = int_to_ptr.hbm [resolvable:$true] %s342
          %345 = dma.vmem_to_hbm [thread:$0]  %s341, 128, %s343, %s328
        $region52: #{tpu_custom_call.1} parent=35 // pred_fallthru
          _
      $region36: #{tpu_custom_call.1} parent=5 // pred_fallthru
        _
      %p346 = scmp.le.s32.totalorder 2, %s17
      // Predicated region
      $region53: #{tpu_custom_call.1} parent=5 // pred_check
        %p347 = pneg %p346
      $region54: #{tpu_custom_call.1} parent=5 // pred_check_branch
        %349 = sbr.rel (%p347) target = $region56
      $region55: #{tpu_custom_call.1} parent=5 // pred_region
        %s350 = ssub.s32 %s17, 2
        // Predicated region
        $region57: #{tpu_custom_call.1} parent=55 // pred_check
          %p351 = pneg %p135
        $region58: #{tpu_custom_call.1} parent=55 // pred_check_branch
          %353 = sbr.rel (%p351) target = $region60
        $region59: #{tpu_custom_call.1} parent=55 // pred_region
          %s354 = sand.u32 %s120, 1
          %s355 = scalar_lea.sflag [#allocation4], %s354
          %s356 = sand.u32 %s120, 1
          %s357 = smul.addr %s356, 8
          %s358 = scalar_lea.vmem [#allocation8], %s357
          %360 = dma.done %s355, 128
        $region60: #{tpu_custom_call.1} parent=55 // pred_fallthru
          _
      $region56: #{tpu_custom_call.1} parent=5 // pred_fallthru
        _
    $region6: #{tpu_custom_call.1} parent=1 // loop_footer
      %s21 = sadd.s32 1, %s17
    $region7: #{tpu_custom_call.1} parent=1 // loop_footer_branch
      %16 = sbr.rel target = $region3
    $region8: #{tpu_custom_call.1} parent=1 // loop_exit
      _
    %361 = vsyncpa [#allocation3], 1
    %s362 = scalar_lea.sflag [#allocation3], 1
    %363 = vsyncpa %s362, 1
    %364 = vsyncpa [#allocation6], 1
    %365 = vsyncpa [#allocation4], 1
    %s366 = scalar_lea.sflag [#allocation4], 1
    %367 = vsyncpa %s366, 1

</llo_original>
